<compile_context>
chip_gen: v7x
topology: tpu7x:2x2x1
jax: 0.10.0
libtpu: 0.0.40
codegen_flags: <defaults>
</compile_context>

<pallas_src>
import jax
import jax.numpy as jnp
from jax.experimental import pallas as pl
from jax.experimental.pallas import tpu as pltpu


# -----------------------------------------------------------------------------
# Kernel 1: ReLU RNN (batch_first PyTorch nn.RNN, nonlinearity='relu')
# -----------------------------------------------------------------------------
def _rnn_relu_step_kernel(x_ref, h0_ref, wih_ref, whh_ref, b_ref, out_ref, h_scr):
    t = pl.program_id(0)

    @pl.when(t == 0)
    def _():
        h_scr[...] = h0_ref[...].astype(jnp.float32)

    x_t = x_ref[...]                                   # [B, D] (time dim squeezed)
    h_prev = h_scr[...].astype(x_t.dtype)              # MXU operands in native dtype
    pre = (jnp.dot(x_t, wih_ref[...], preferred_element_type=jnp.float32)
           + jnp.dot(h_prev, whh_ref[...], preferred_element_type=jnp.float32)
           + b_ref[...].astype(jnp.float32))
    h_new = jnp.maximum(pre, 0.0)                      # ReLU nonlinearity
    h_scr[...] = h_new
    out_ref[...] = h_new.astype(out_ref.dtype)


def rnn_relu_forward(x_tm, h0, w_ih, w_hh, b_ih, b_hh):
    """x_tm: [T, B, D] time-major input; weights in PyTorch nn.RNN layout."""
    T, B, D = x_tm.shape
    H = w_hh.shape[0]
    dtype = x_tm.dtype

    # Layout plumbing outside the kernel: pre-transpose weights, fuse biases.
    wih_t = jnp.transpose(w_ih)                        # [D, H]
    whh_t = jnp.transpose(w_hh)                        # [H, H]
    b = (b_ih + b_hh).reshape(1, H)

    itemsize = jnp.dtype(dtype).itemsize
    bytes_accessed = int((x_tm.size + h0.size + wih_t.size + whh_t.size + b.size
                          + T * B * H) * itemsize)
    flops = int(2 * T * B * H * (D + H))

    return pl.pallas_call(
        _rnn_relu_step_kernel,
        out_shape=jax.ShapeDtypeStruct((T, B, H), dtype),
        grid=(T,),
        in_specs=[
            pl.BlockSpec((None, B, D), lambda t: (t, 0, 0)),   # x_t
            pl.BlockSpec((B, H), lambda t: (0, 0)),            # h0
            pl.BlockSpec((D, H), lambda t: (0, 0)),            # W_ih^T (resident)
            pl.BlockSpec((H, H), lambda t: (0, 0)),            # W_hh^T (resident)
            pl.BlockSpec((1, H), lambda t: (0, 0)),            # b_ih + b_hh
        ],
        out_specs=pl.BlockSpec((None, B, H), lambda t: (t, 0, 0)),
        scratch_shapes=[pltpu.VMEM((B, H), jnp.float32)],
        compiler_params=pltpu.CompilerParams(dimension_semantics=("arbitrary",)),
        cost_estimate=pl.CostEstimate(flops=flops, transcendentals=0,
                                      bytes_accessed=bytes_accessed),
    )(x_tm, h0, wih_t, whh_t, b)


# -----------------------------------------------------------------------------
# Kernel 2: fused per-row heads: combiner_vi + emitter_x + emitter_y
# -----------------------------------------------------------------------------
def _heads_kernel(h_ref, wc_ref, bc_ref,
                  w1x_ref, b1x_ref, w2x_ref, b2x_ref, wox_ref, box_ref,
                  w1y_ref, b1y_ref, w2y_ref, b2y_ref, woy_ref, boy_ref,
                  z_ref, x_ref, y_ref):
    h = h_ref[...]                                     # [n, H], native dtype
    in_dtype = h.dtype
    f32 = jnp.float32

    def linear(a, w_ref, b_ref):
        # Native-dtype MXU operands, f32 accumulation, f32 bias add.
        return (jnp.dot(a, w_ref[...], preferred_element_type=f32)
                + b_ref[...].astype(f32))

    # combiner_vi: one fused matmul -> lane-dense [n, 2Z] slab = [loc | pre_scale]
    zc = linear(h, wc_ref, bc_ref)
    z_half = zc.shape[-1] // 2
    lane_z = jax.lax.broadcasted_iota(jnp.int32, zc.shape, 1)
    sp = jnp.where(zc > 20.0, zc,
                   jnp.log1p(jnp.exp(jnp.minimum(zc, 20.0))))  # PyTorch softplus (threshold=20)
    z_slab = jnp.where(lane_z < z_half, zc, sp)
    z_ref[...] = z_slab.astype(z_ref.dtype)

    # Emitters read z_loc through zero-padded first-layer weights, so the fused
    # slab feeds them directly (no lane slicing / concatenation in-kernel).
    zin = z_slab.astype(in_dtype)

    def emitter(w1_ref, b1_ref, w2_ref, b2_ref, wo_ref, bo_ref, out_ref):
        h1 = jnp.maximum(linear(zin, w1_ref, b1_ref), 0.0)
        h2 = jnp.maximum(linear(h1.astype(in_dtype), w2_ref, b2_ref), 0.0)
        o = linear(h2.astype(in_dtype), wo_ref, bo_ref)            # [n, 2*out] slab
        d = o.shape[-1] // 2
        lane = jax.lax.broadcasted_iota(jnp.int32, o.shape, 1)
        out_ref[...] = jnp.where(lane < d, o, jnp.exp(o)).astype(out_ref.dtype)

    emitter(w1x_ref, b1x_ref, w2x_ref, b2x_ref, wox_ref, box_ref, x_ref)
    emitter(w1y_ref, b1y_ref, w2y_ref, b2y_ref, woy_ref, boy_ref, y_ref)


def _pick_row_tile(n):
    # Large batches: tile rows (multiple of 8, lane-dense weights stay resident),
    # mark the row axis "parallel" so v7x's two TensorCores both get work.
    for t in (512, 256, 128):
        if n >= 2 * t and n % t == 0:
            return t
    return n


def _heads_forward(h_rows, *weights):
    n, H = h_rows.shape
    dtype = h_rows.dtype
    wc, wox, woy = weights[0], weights[6], weights[12]
    two_z, two_x, two_y = wc.shape[1], wox.shape[1], woy.shape[1]
    ex_dim, ey_dim = weights[4].shape[0], weights[10].shape[0]

    row_tile = _pick_row_tile(n)
    grid = (n // row_tile,)

    def row_spec(width):
        return pl.BlockSpec((row_tile, width), lambda i: (i, 0))

    def full_spec(arr):
        return pl.BlockSpec(arr.shape, lambda i: (0, 0))

    itemsize = jnp.dtype(dtype).itemsize
    bytes_accessed = int((h_rows.size + sum(w.size for w in weights)
                          + n * (two_z + two_x + two_y)) * itemsize)
    flops = int(2 * n * (H * two_z
                         + two_z * ex_dim + ex_dim * ex_dim + ex_dim * two_x
                         + two_z * ey_dim + ey_dim * ey_dim + ey_dim * two_y))
    transcendentals = int(n * (two_z + two_x + two_y))

    return pl.pallas_call(
        _heads_kernel,
        out_shape=(jax.ShapeDtypeStruct((n, two_z), dtype),
                   jax.ShapeDtypeStruct((n, two_x), dtype),
                   jax.ShapeDtypeStruct((n, two_y), dtype)),
        grid=grid,
        in_specs=[row_spec(H)] + [full_spec(w) for w in weights],
        out_specs=(row_spec(two_z), row_spec(two_x), row_spec(two_y)),
        compiler_params=pltpu.CompilerParams(dimension_semantics=("parallel",)),
        cost_estimate=pl.CostEstimate(flops=flops, transcendentals=transcendentals,
                                      bytes_accessed=bytes_accessed),
    )(h_rows, *weights)


# -----------------------------------------------------------------------------
# Full InfoDPCCA_2.forward wrapper (rnn4vi=True, res_con=False)
# -----------------------------------------------------------------------------
def infodpcca2_forward(p, mbx, mby, z_dims):
    z0d, z1d, z2d = z_dims
    Z = z0d + z1d + z2d
    B, T, x_dim = mbx.shape
    y_dim = mby.shape[-1]
    dtype = mbx.dtype
    H = p["rnn_w_hh"].shape[0]

    # ---- RNN over concatenated [x, y] (rnn4vi path) ----
    xy_tm = jnp.transpose(jnp.concatenate([mbx, mby], axis=-1), (1, 0, 2))  # [T,B,D]
    h0 = jnp.broadcast_to(p["h_vi_0"].reshape(1, H), (B, H)).astype(dtype)
    rnn_tm = rnn_relu_forward(xy_tm, h0, p["rnn_w_ih"], p["rnn_w_hh"],
                              p["rnn_b_ih"], p["rnn_b_hh"])                  # [T,B,H]

    # Rows consumed by the per-timestep heads: time indices 1 .. T-1 (t-1 for
    # t in 2..T). All (T-1)*B rows go through ONE fused pallas_call.
    h_rows = rnn_tm[1:].reshape((T - 1) * B, H)

    # ---- wrapper-side weight fusion (layout plumbing, outside the kernel) ----
    wc = jnp.concatenate([p["c_w_loc"].T, p["c_w_scale"].T], axis=1)         # [H, 2Z]
    bc = jnp.concatenate([p["c_b_loc"], p["c_b_scale"]]).reshape(1, 2 * Z)

    ex_dim = p["ex_w2"].shape[0]
    ey_dim = p["ey_w2"].shape[0]

    # First emitter layers consume the fused [.., 2Z] slab: zero the rows they
    # ignore (z2 / z1 / the whole scale half).
    w1x = jnp.zeros((2 * Z, ex_dim), p["ex_w1"].dtype).at[:z0d + z1d, :].set(p["ex_w1"].T)
    w1y = (jnp.zeros((2 * Z, ey_dim), p["ey_w1"].dtype)
           .at[:z0d, :].set(p["ey_w1"].T[:z0d])
           .at[z0d + z1d:Z, :].set(p["ey_w1"].T[z0d:]))
    b1x = p["ex_b1"].reshape(1, -1)
    b1y = p["ey_b1"].reshape(1, -1)
    w2x, b2x = p["ex_w2"].T, p["ex_b2"].reshape(1, -1)
    w2y, b2y = p["ey_w2"].T, p["ey_b2"].reshape(1, -1)
    wox = jnp.concatenate([p["ex_w_loc"].T, p["ex_w_scale"].T], axis=1)      # [Ex, 2*x_dim]
    box = jnp.concatenate([p["ex_b_loc"], p["ex_b_scale"]]).reshape(1, -1)
    woy = jnp.concatenate([p["ey_w_loc"].T, p["ey_w_scale"].T], axis=1)
    boy = jnp.concatenate([p["ey_b_loc"], p["ey_b_scale"]]).reshape(1, -1)

    z_slab, x_slab, y_slab = _heads_forward(
        h_rows, wc, bc,
        w1x, b1x, w2x, b2x, wox, box,
        w1y, b1y, w2y, b2y, woy, boy)

    def split_to_btd(slab, d):
        a = jnp.transpose(slab.reshape(T - 1, B, 2 * d), (1, 0, 2))          # [B,T-1,2d]
        return a[..., :d], a[..., d:]

    z_loc_t, z_scale_t = split_to_btd(z_slab, Z)
    x_loc_t, x_scale_t = split_to_btd(x_slab, x_dim)
    y_loc_t, y_scale_t = split_to_btd(y_slab, y_dim)

    def assemble(d, loc_t, scale_t, first_loc=None):
        loc = jnp.zeros((B, T, d), dtype)
        if first_loc is not None:
            loc = loc.at[:, 0, :].set(first_loc)
        loc = loc.at[:, 1:, :].set(loc_t)
        scale = jnp.zeros((B, T, d), dtype).at[:, 1:, :].set(scale_t)
        return loc, scale

    recon_x_loc, recon_x_scale = assemble(x_dim, x_loc_t, x_scale_t, mbx[:, 0, :])
    recon_y_loc, recon_y_scale = assemble(y_dim, y_loc_t, y_scale_t, mby[:, 0, :])
    recon_z_loc, recon_z_scale = assemble(Z, z_loc_t, z_scale_t)

    return (recon_x_loc, recon_y_loc, recon_z_loc,
            recon_x_scale, recon_y_scale, recon_z_scale)


# -----------------------------------------------------------------------------
# Pure-JAX reference (mirrors the PyTorch forward)
# -----------------------------------------------------------------------------
def _reference_forward(p, mbx, mby, z_dims):
    z0d, z1d, z2d = z_dims
    Z = z0d + z1d + z2d
    B, T, x_dim = mbx.shape
    y_dim = mby.shape[-1]
    dtype = mbx.dtype
    H = p["rnn_w_hh"].shape[0]

    xy_tm = jnp.transpose(jnp.concatenate([mbx, mby], axis=-1), (1, 0, 2))
    h0 = jnp.broadcast_to(p["h_vi_0"].reshape(1, H), (B, H))

    def step(h, x_t):
        h_new = jax.nn.relu(x_t @ p["rnn_w_ih"].T + p["rnn_b_ih"]
                            + h @ p["rnn_w_hh"].T + p["rnn_b_hh"])
        return h_new, h_new

    _, rnn_tm = jax.lax.scan(step, h0, xy_tm)                 # [T, B, H]
    hr = rnn_tm[1:].reshape((T - 1) * B, H)

    def softplus(v):
        return jnp.where(v > 20.0, v, jnp.log1p(jnp.exp(jnp.minimum(v, 20.0))))

    z_loc = hr @ p["c_w_loc"].T + p["c_b_loc"]
    z_scale = softplus(hr @ p["c_w_scale"].T + p["c_b_scale"])
    z0, z1, z2 = z_loc[:, :z0d], z_loc[:, z0d:z0d + z1d], z_loc[:, z0d + z1d:]

    def emitter(zin, pre):
        h1 = jax.nn.relu(zin @ p[pre + "_w1"].T + p[pre + "_b1"])
        h2 = jax.nn.relu(h1 @ p[pre + "_w2"].T + p[pre + "_b2"])
        loc = h2 @ p[pre + "_w_loc"].T + p[pre + "_b_loc"]
        scale = jnp.exp(h2 @ p[pre + "_w_scale"].T + p[pre + "_b_scale"])
        return loc, scale

    x_loc, x_scale = emitter(jnp.concatenate([z0, z1], axis=1), "ex")
    y_loc, y_scale = emitter(jnp.concatenate([z0, z2], axis=1), "ey")

    def to_btd(a, d):
        return jnp.transpose(a.reshape(T - 1, B, d), (1, 0, 2))

    def assemble(d, loc, scale, first=None):
        l = jnp.zeros((B, T, d), dtype)
        if first is not None:
            l = l.at[:, 0, :].set(first)
        l = l.at[:, 1:, :].set(to_btd(loc, d))
        s = jnp.zeros((B, T, d), dtype).at[:, 1:, :].set(to_btd(scale, d))
        return l, s

    rxl, rxs = assemble(x_dim, x_loc, x_scale, mbx[:, 0, :])
    ryl, rys = assemble(y_dim, y_loc, y_scale, mby[:, 0, :])
    rzl, rzs = assemble(Z, z_loc, z_scale)
    return rxl, ryl, rzl, rxs, rys, rzs


# -----------------------------------------------------------------------------
if __name__ == "__main__":
    # Small shapes consistent with the module.
    B, T = 2, 6
    x_dim = y_dim = 8
    z0d = z1d = z2d = 4
    ex_dim = ey_dim = 16
    rnn_vi_dim = 32
    z_dims = (z0d, z1d, z2d)
    Z = z0d + z1d + z2d

    key = jax.random.PRNGKey(0)
    keys = iter(jax.random.split(key, 32))

    def nrm(shape, scale=0.1):
        return jax.random.normal(next(keys), shape, dtype=jnp.float32) * scale

    p = {
        # nn.RNN(input=x_dim+y_dim, hidden=rnn_vi_dim, nonlinearity='relu')
        "rnn_w_ih": nrm((rnn_vi_dim, x_dim + y_dim)),
        "rnn_w_hh": nrm((rnn_vi_dim, rnn_vi_dim)),
        "rnn_b_ih": nrm((rnn_vi_dim,)),
        "rnn_b_hh": nrm((rnn_vi_dim,)),
        "h_vi_0": nrm((rnn_vi_dim,)),
        # combiner_vi = Combiner(z0+z1+z2, rnn_vi_dim)
        "c_w_loc": nrm((Z, rnn_vi_dim)),
        "c_b_loc": nrm((Z,)),
        "c_w_scale": nrm((Z, rnn_vi_dim)),
        "c_b_scale": nrm((Z,)),
        # emitter_x = Emitter(x_dim, z0+z1, emission_x_dim)
        "ex_w1": nrm((ex_dim, z0d + z1d)),
        "ex_b1": nrm((ex_dim,)),
        "ex_w2": nrm((ex_dim, ex_dim)),
        "ex_b2": nrm((ex_dim,)),
        "ex_w_loc": nrm((x_dim, ex_dim)),
        "ex_b_loc": nrm((x_dim,)),
        "ex_w_scale": nrm((x_dim, ex_dim)),
        "ex_b_scale": nrm((x_dim,)),
        # emitter_y = Emitter(y_dim, z0+z2, emission_y_dim)
        "ey_w1": nrm((ey_dim, z0d + z2d)),
        "ey_b1": nrm((ey_dim,)),
        "ey_w2": nrm((ey_dim, ey_dim)),
        "ey_b2": nrm((ey_dim,)),
        "ey_w_loc": nrm((y_dim, ey_dim)),
        "ey_b_loc": nrm((y_dim,)),
        "ey_w_scale": nrm((y_dim, ey_dim)),
        "ey_b_scale": nrm((y_dim,)),
    }

    mbx = jax.random.normal(next(keys), (B, T, x_dim), dtype=jnp.float32) * 0.5
    mby = jax.random.normal(next(keys), (B, T, y_dim), dtype=jnp.float32) * 0.5

    outs = infodpcca2_forward(p, mbx, mby, z_dims)
    jax.block_until_ready(outs)

    refs = _reference_forward(p, mbx, mby, z_dims)
    names = ("recon_x_loc", "recon_y_loc", "recon_z_loc",
             "recon_x_scale", "recon_y_scale", "recon_z_scale")
    for name, got, want in zip(names, outs, refs):
        assert got.shape == want.shape, (name, got.shape, want.shape)
        assert jnp.allclose(got, want, atol=2e-4, rtol=2e-4), name
    assert bool(jnp.all(outs[5][:, 1:, :] > 0.0))   # recon_z_scale positive

    print("KERNEL_OK")
</pallas_src>

<mosaic_0001>
module attributes {stable_mosaic.version = 11 : i64} {
  func.func @_rnn_relu_step_kernel(%arg0: i32, %arg1: memref<1x2x16xf32, #tpu.memory_space<vmem>>, %arg2: memref<2x32xf32, #tpu.memory_space<vmem>>, %arg3: memref<16x32xf32, #tpu.memory_space<vmem>>, %arg4: memref<32x32xf32, #tpu.memory_space<vmem>>, %arg5: memref<1x32xf32, #tpu.memory_space<vmem>>, %arg6: memref<1x2x32xf32, #tpu.memory_space<vmem>>, %arg7: memref<2x32xf32, #tpu.memory_space<vmem>>) attributes {dimension_semantics = [#tpu.dimension_semantics<arbitrary>], iteration_bounds = array<i64: 6>, scalar_prefetch = 0 : i64, scratch_operands = 1 : i64, tpu.core_type = #tpu.core_type<tc>, window_params = [{transform_indices = @transform_0, window_bounds = array<i64: 1, 2, 16>}, {pipeline_mode = #tpu.pipeline_mode<synchronous>, transform_indices = @transform_1, window_bounds = array<i64: 2, 32>}, {pipeline_mode = #tpu.pipeline_mode<synchronous>, transform_indices = @transform_2, window_bounds = array<i64: 16, 32>}, {pipeline_mode = #tpu.pipeline_mode<synchronous>, transform_indices = @transform_3, window_bounds = array<i64: 32, 32>}, {pipeline_mode = #tpu.pipeline_mode<synchronous>, transform_indices = @transform_4, window_bounds = array<i64: 1, 32>}, {transform_indices = @transform_5, window_bounds = array<i64: 1, 2, 32>}]} {
    %c0_i32 = arith.constant 0 : i32
    %0 = arith.cmpi eq, %arg0, %c0_i32 : i32
    %1 = arith.extui %0 : i1 to i32
    %c0_i32_0 = arith.constant 0 : i32
    %2 = arith.cmpi ne, %1, %c0_i32_0 : i32
    scf.if %2 {
      %c0_18 = arith.constant 0 : index
      %c0_19 = arith.constant 0 : index
      %20 = vector.load %arg2[%c0_18, %c0_19] : memref<2x32xf32, #tpu.memory_space<vmem>>, vector<2x32xf32>
      %c0_20 = arith.constant 0 : index
      %c0_21 = arith.constant 0 : index
      %21 = vector.load %arg7[%c0_20, %c0_21] : memref<2x32xf32, #tpu.memory_space<vmem>>, vector<2x32xf32>
      tpu.vector_store %arg7[%c0_20, %c0_21], %20 {strides = array<i32>} : memref<2x32xf32, #tpu.memory_space<vmem>>, vector<2x32xf32>,
    } else {
    }
    %c0 = arith.constant 0 : index
    %c0_1 = arith.constant 0 : index
    %c0_2 = arith.constant 0 : index
    %3 = vector.load %arg1[%c0, %c0_1, %c0_2] : memref<1x2x16xf32, #tpu.memory_space<vmem>>, vector<1x2x16xf32>
    %4 = vector.shape_cast %3 : vector<1x2x16xf32> to vector<2x16xf32>
    %c0_3 = arith.constant 0 : index
    %c0_4 = arith.constant 0 : index
    %5 = vector.load %arg7[%c0_3, %c0_4] : memref<2x32xf32, #tpu.memory_space<vmem>>, vector<2x32xf32>
    %c0_5 = arith.constant 0 : index
    %c0_6 = arith.constant 0 : index
    %6 = vector.load %arg3[%c0_5, %c0_6] : memref<16x32xf32, #tpu.memory_space<vmem>>, vector<16x32xf32>
    %cst = arith.constant dense<0.000000e+00> : vector<2x32xf32>
    %7 = tpu.matmul %4, %6, %cst {dimension_numbers = #tpu.dot_dimension_numbers<[1], [0], [0], [1], [0, 0, 1, 1], [], []>} : vector<2x16xf32>, vector<16x32xf32>, vector<2x32xf32> -> vector<2x32xf32>
    %c0_7 = arith.constant 0 : index
    %c0_8 = arith.constant 0 : index
    %8 = vector.load %arg4[%c0_7, %c0_8] : memref<32x32xf32, #tpu.memory_space<vmem>>, vector<32x32xf32>
    %cst_9 = arith.constant dense<0.000000e+00> : vector<2x32xf32>
    %9 = tpu.matmul %5, %8, %cst_9 {dimension_numbers = #tpu.dot_dimension_numbers<[1], [0], [0], [1], [0, 0, 1, 1], [], []>} : vector<2x32xf32>, vector<32x32xf32>, vector<2x32xf32> -> vector<2x32xf32>
    %10 = arith.addf %7, %9 : vector<2x32xf32>
    %c0_10 = arith.constant 0 : index
    %c0_11 = arith.constant 0 : index
    %11 = vector.load %arg5[%c0_10, %c0_11] : memref<1x32xf32, #tpu.memory_space<vmem>>, vector<1x32xf32>
    %12 = vector.broadcast %11 : vector<1x32xf32> to vector<2x32xf32>
    %13 = arith.addf %10, %12 : vector<2x32xf32>
    %cst_12 = arith.constant 0.000000e+00 : f32
    %14 = vector.broadcast %cst_12 : f32 to vector<2x32xf32>
    %15 = arith.maximumf %13, %14 : vector<2x32xf32>
    %c0_13 = arith.constant 0 : index
    %c0_14 = arith.constant 0 : index
    %16 = vector.load %arg7[%c0_13, %c0_14] : memref<2x32xf32, #tpu.memory_space<vmem>>, vector<2x32xf32>
    tpu.vector_store %arg7[%c0_13, %c0_14], %15 {strides = array<i32>} : memref<2x32xf32, #tpu.memory_space<vmem>>, vector<2x32xf32>,
    %c0_15 = arith.constant 0 : index
    %c0_16 = arith.constant 0 : index
    %c0_17 = arith.constant 0 : index
    %17 = vector.load %arg6[%c0_15, %c0_16, %c0_17] : memref<1x2x32xf32, #tpu.memory_space<vmem>>, vector<1x2x32xf32>
    %18 = vector.shape_cast %17 : vector<1x2x32xf32> to vector<2x32xf32>
    %19 = vector.shape_cast %15 : vector<2x32xf32> to vector<1x2x32xf32>
    tpu.vector_store %arg6[%c0_15, %c0_16, %c0_17], %19 {strides = array<i32>} : memref<1x2x32xf32, #tpu.memory_space<vmem>>, vector<1x2x32xf32>,
    return
  }
  func.func @transform_0(%arg0: i32) -> (i32, i32, i32) {
    %c0_i32 = arith.constant 0 : i32
    %c0_i32_0 = arith.constant 0 : i32
    %c0_i32_1 = arith.constant 0 : i32
    return %arg0, %c0_i32, %c0_i32_0 : i32, i32, i32
  }
  func.func @transform_1(%arg0: i32) -> (i32, i32) {
    %c0_i32 = arith.constant 0 : i32
    %c0_i32_0 = arith.constant 0 : i32
    %c0_i32_1 = arith.constant 0 : i32
    return %c0_i32, %c0_i32_0 : i32, i32
  }
  func.func @transform_2(%arg0: i32) -> (i32, i32) {
    %c0_i32 = arith.constant 0 : i32
    %c0_i32_0 = arith.constant 0 : i32
    %c0_i32_1 = arith.constant 0 : i32
    return %c0_i32, %c0_i32_0 : i32, i32
  }
  func.func @transform_3(%arg0: i32) -> (i32, i32) {
    %c0_i32 = arith.constant 0 : i32
    %c0_i32_0 = arith.constant 0 : i32
    %c0_i32_1 = arith.constant 0 : i32
    return %c0_i32, %c0_i32_0 : i32, i32
  }
  func.func @transform_4(%arg0: i32) -> (i32, i32) {
    %c0_i32 = arith.constant 0 : i32
    %c0_i32_0 = arith.constant 0 : i32
    %c0_i32_1 = arith.constant 0 : i32
    return %c0_i32, %c0_i32_0 : i32, i32
  }
  func.func @transform_5(%arg0: i32) -> (i32, i32, i32) {
    %c0_i32 = arith.constant 0 : i32
    %c0_i32_0 = arith.constant 0 : i32
    %c0_i32_1 = arith.constant 0 : i32
    return %arg0, %c0_i32, %c0_i32_0 : i32, i32, i32
  }
}

</mosaic_0001>

<llo_original>
// kernel: tpu_custom_call.1
$region0: #{tpu_custom_call.1}
  #allocation0 [shape = 'u32[]', space=smem, size = 0x4, offset = 0x4, fixed_abs, tag = 'smem constant byte address 0x4 - core index']
  #allocation1 [shape = 'u32[144,128]{1,0:T(1,128)}', space=vmem, size = 0x12000, scoped, tag = 'internal scratch']
  #allocation2 [shape = 'f32[2,32]{1,0:T(2,128)}', space=vmem, size = 0x400, scoped, tag = 'scratch operand']
  %s0 = inlined_call_operand.hbm [shape: f32[6,2,16], index: 0, kind: input, shape index: {}]
  %s1 = inlined_call_operand.vmem [shape: f32[2,32], index: 1, kind: input, shape index: {}]
  %s2 = inlined_call_operand.hbm [shape: f32[16,32], index: 2, kind: input, shape index: {}]
  %s3 = inlined_call_operand.hbm [shape: f32[32,32], index: 3, kind: input, shape index: {}]
  %s4 = inlined_call_operand.vmem [shape: f32[1,32], index: 4, kind: input, shape index: {}]
  %s5 = inlined_call_operand.hbm [shape: f32[6,2,32], index: 5, kind: output, shape index: {}]
  %s6 = sld [smem:[#allocation0]]
  $region69: #{tpu_custom_call.1} parent=0
    _
  %s8 = ssub.s32 1, %s6
  %s9 = scalar_select 0, %s8, %s6
  $region1: #{tpu_custom_call.1} parent=0
    #allocation3 [shape = 'u8[2048]{0}', space=vmem, size = 0x800, scoped, tag = 'input window, operand 0']
    #allocation4 [shape = 's32[2]{0}', space=sflag, size = 0x8, scoped, tag = 'scoped memory for tpu_custom_call.1']
    #allocation5 [shape = 's32[2]{0}', space=sflag, size = 0x8, scoped, tag = 'scoped memory for tpu_custom_call.1']
    #allocation6 [shape = 'u8[8192]{0}', space=vmem, size = 0x2000, scoped, tag = 'input window, operand 2, single buffered']
    #allocation7 [shape = 's32[1]{0}', space=sflag, size = 0x4, scoped, tag = 'scoped memory for tpu_custom_call.1']
    #allocation8 [shape = 'u8[16384]{0}', space=vmem, size = 0x4000, scoped, tag = 'input window, operand 3, single buffered']
    #allocation9 [shape = 'u8[2048]{0}', space=vmem, size = 0x800, scoped, tag = 'output window, operand 0']
    %10 = vsyncpa [#allocation4], 0
    %s11 = scalar_lea.sflag [#allocation4], 1
    %12 = vsyncpa %s11, 0
    %13 = vsyncpa [#allocation7], 0
    %14 = vsyncpa [#allocation5], 0
    %s15 = scalar_lea.sflag [#allocation5], 1
    %16 = vsyncpa %s15, 0
    loop: start=0, step=1, limit=8
    $region2: #{tpu_custom_call.1} parent=1 // loop_pre_header
      _
    $region3: #{tpu_custom_call.1} parent=1 // loop_header
      %s18 = sphi 0, %s22
      %p19 = scmp.ge.s32.totalorder %s18, 8
      %s28 = sphi 0, %s30
      %s31 = sphi 0, %s28
      %s32 = sphi 0, %s31
      %s48 = sphi 0, %s32
      %s52 = sphi 0, %s52
      %s54 = sphi 0, %s52
      %s55 = sphi 0, %s54
      %s69 = sphi 0, %s55
      %s73 = sphi 0, %s73
      %s75 = sphi 0, %s73
      %s76 = sphi 0, %s75
      %s90 = sphi 0, %s76
      %s94 = sphi 0, %s94
      %s96 = sphi 0, %s94
      %s97 = sphi 0, %s96
      %s111 = sphi 0, %s97
      %s115 = sphi 0, %s115
      %s117 = sphi 0, %s115
      %s118 = sphi 0, %s117
      %s132 = sphi 0, %s118
      %s138 = sphi 0, %s140
      %s141 = sphi 0, %s138
      %s142 = sphi 0, %s141
      %s158 = sphi 0, %s142
    $region4: #{tpu_custom_call.1} parent=1 // loop_header_branch
      %21 = sbr.rel (%p19) target = $region8
    $region5: #{tpu_custom_call.1} parent=1 // loop_body
      %s23 = ssub.s32 %s18, 1
      %s24 = ssub.s32 %s18, 2
      %s25 = sadd.s32 %s18, 1
      %s26 = ssub.s32 %s18, %s25
      %p27 = scmp.eq.s32.totalorder %s26, 0
      %s29 = sadd.s32 %s28, 1
      %s30 = scalar_select %p27, %s28, %s29
      %p33 = pneg %p27
      %p34 = scmp.eq.s32.totalorder %s18, 5
      %p35 = por %p33, %p34
      %p36 = scmp.ne.s32.totalorder %s28, %s31
      %p37 = scmp.eq.s32.totalorder %s18, 0
      %p38 = por %p36, %p37
      %p39 = scmp.ne.s32.totalorder %s28, %s31
      %p40 = scmp.eq.s32.totalorder %s23, 5
      %p41 = por %p39, %p40
      %p42 = scmp.ne.s32.totalorder %s31, %s32
      %p43 = scmp.eq.s32.totalorder %s23, 0
      %p44 = por %p42, %p43
      %p45 = scmp.ne.s32.totalorder %s31, %s32
      %p46 = scmp.eq.s32.totalorder %s24, 5
      %p47 = por %p45, %p46
      %p49 = scmp.ne.s32.totalorder %s32, %s48
      %p50 = scmp.eq.s32.totalorder %s24, 0
      %p51 = por %p49, %p50
      %s53 = sadd.s32 %s52, 1
      %p56 = scmp.eq.s32.totalorder %s18, 5
      %p57 = scmp.ne.s32.totalorder %s52, %s54
      %p58 = scmp.eq.s32.totalorder %s18, 0
      %p59 = por %p57, %p58
      %p60 = scmp.ne.s32.totalorder %s52, %s54
      %p61 = scmp.eq.s32.totalorder %s23, 5
      %p62 = por %p60, %p61
      %p63 = scmp.ne.s32.totalorder %s54, %s55
      %p64 = scmp.eq.s32.totalorder %s23, 0
      %p65 = por %p63, %p64
      %p66 = scmp.ne.s32.totalorder %s54, %s55
      %p67 = scmp.eq.s32.totalorder %s24, 5
      %p68 = por %p66, %p67
      %p70 = scmp.ne.s32.totalorder %s55, %s69
      %p71 = scmp.eq.s32.totalorder %s24, 0
      %p72 = por %p70, %p71
      %s74 = sadd.s32 %s73, 1
      %p77 = scmp.eq.s32.totalorder %s18, 5
      %p78 = scmp.ne.s32.totalorder %s73, %s75
      %p79 = scmp.eq.s32.totalorder %s18, 0
      %p80 = por %p78, %p79
      %p81 = scmp.ne.s32.totalorder %s73, %s75
      %p82 = scmp.eq.s32.totalorder %s23, 5
      %p83 = por %p81, %p82
      %p84 = scmp.ne.s32.totalorder %s75, %s76
      %p85 = scmp.eq.s32.totalorder %s23, 0
      %p86 = por %p84, %p85
      %p87 = scmp.ne.s32.totalorder %s75, %s76
      %p88 = scmp.eq.s32.totalorder %s24, 5
      %p89 = por %p87, %p88
      %p91 = scmp.ne.s32.totalorder %s76, %s90
      %p92 = scmp.eq.s32.totalorder %s24, 0
      %p93 = por %p91, %p92
      %s95 = sadd.s32 %s94, 1
      %p98 = scmp.eq.s32.totalorder %s18, 5
      %p99 = scmp.ne.s32.totalorder %s94, %s96
      %p100 = scmp.eq.s32.totalorder %s18, 0
      %p101 = por %p99, %p100
      %p102 = scmp.ne.s32.totalorder %s94, %s96
      %p103 = scmp.eq.s32.totalorder %s23, 5
      %p104 = por %p102, %p103
      %p105 = scmp.ne.s32.totalorder %s96, %s97
      %p106 = scmp.eq.s32.totalorder %s23, 0
      %p107 = por %p105, %p106
      %p108 = scmp.ne.s32.totalorder %s96, %s97
      %p109 = scmp.eq.s32.totalorder %s24, 5
      %p110 = por %p108, %p109
      %p112 = scmp.ne.s32.totalorder %s97, %s111
      %p113 = scmp.eq.s32.totalorder %s24, 0
      %p114 = por %p112, %p113
      %s116 = sadd.s32 %s115, 1
      %p119 = scmp.eq.s32.totalorder %s18, 5
      %p120 = scmp.ne.s32.totalorder %s115, %s117
      %p121 = scmp.eq.s32.totalorder %s18, 0
      %p122 = por %p120, %p121
      %p123 = scmp.ne.s32.totalorder %s115, %s117
      %p124 = scmp.eq.s32.totalorder %s23, 5
      %p125 = por %p123, %p124
      %p126 = scmp.ne.s32.totalorder %s117, %s118
      %p127 = scmp.eq.s32.totalorder %s23, 0
      %p128 = por %p126, %p127
      %p129 = scmp.ne.s32.totalorder %s117, %s118
      %p130 = scmp.eq.s32.totalorder %s24, 5
      %p131 = por %p129, %p130
      %p133 = scmp.ne.s32.totalorder %s118, %s132
      %p134 = scmp.eq.s32.totalorder %s24, 0
      %p135 = por %p133, %p134
      %s136 = ssub.s32 %s18, %s25
      %p137 = scmp.eq.s32.totalorder %s136, 0
      %s139 = sadd.s32 %s138, 1
      %s140 = scalar_select %p137, %s138, %s139
      %p143 = pneg %p137
      %p144 = scmp.eq.s32.totalorder %s18, 5
      %p145 = por %p143, %p144
      %p146 = scmp.ne.s32.totalorder %s138, %s141
      %p147 = scmp.eq.s32.totalorder %s18, 0
      %p148 = por %p146, %p147
      %p149 = scmp.ne.s32.totalorder %s138, %s141
      %p150 = scmp.eq.s32.totalorder %s23, 5
      %p151 = por %p149, %p150
      %p152 = scmp.ne.s32.totalorder %s141, %s142
      %p153 = scmp.eq.s32.totalorder %s23, 0
      %p154 = por %p152, %p153
      %p155 = scmp.ne.s32.totalorder %s141, %s142
      %p156 = scmp.eq.s32.totalorder %s24, 5
      %p157 = por %p155, %p156
      %p159 = scmp.ne.s32.totalorder %s142, %s158
      %p160 = scmp.eq.s32.totalorder %s24, 0
      %p161 = por %p159, %p160
      %p162 = scmp.le.s32.totalorder 1, %s18
      %p163 = scmp.lt.s32.totalorder %s18, 7
      %p164 = pnand %p162, %p163
      %p165 = pneg %p164
      // Predicated region
      $region9: #{tpu_custom_call.1} parent=5 // pred_check
        _
      $region10: #{tpu_custom_call.1} parent=5 // pred_check_branch
        %167 = sbr.rel (%p164) target = $region12
      $region11: #{tpu_custom_call.1} parent=5 // pred_region
        %s168 = ssub.s32 %s18, 1
        // Predicated region
        $region13: #{tpu_custom_call.1} parent=11 // pred_check
          %p169 = pneg %p65
        $region14: #{tpu_custom_call.1} parent=11 // pred_check_branch
          %171 = sbr.rel (%p169) target = $region16
        $region15: #{tpu_custom_call.1} parent=11 // pred_region
          _
        $region16: #{tpu_custom_call.1} parent=11 // pred_fallthru
          _
        // Predicated region
        $region17: #{tpu_custom_call.1} parent=11 // pred_check
          %p172 = pneg %p86
        $region18: #{tpu_custom_call.1} parent=11 // pred_check_branch
          %174 = sbr.rel (%p172) target = $region20
        $region19: #{tpu_custom_call.1} parent=11 // pred_region
          %s176 = ssub.s32 256, 256
          %177 = vsyncadd [#allocation7], %s176
          %s178 = sshll.u32 [#allocation6], 4
          %s179 = int_to_ptr.vmem [resolvable:$true] %s178
          %184 = dma.hbm_to_vmem [thread:$0]  %s2, 256, %s179, [#allocation7], 128, 128, 8
        $region20: #{tpu_custom_call.1} parent=11 // pred_fallthru
          _
        // Predicated region
        $region21: #{tpu_custom_call.1} parent=11 // pred_check
          %p185 = pneg %p107
        $region22: #{tpu_custom_call.1} parent=11 // pred_check_branch
          %187 = sbr.rel (%p185) target = $region24
        $region23: #{tpu_custom_call.1} parent=11 // pred_region
          %s189 = ssub.s32 512, 512
          %190 = vsyncadd [#allocation7], %s189
          %s191 = sshll.u32 [#allocation8], 4
          %s192 = int_to_ptr.vmem [resolvable:$true] %s191
          %197 = dma.hbm_to_vmem [thread:$0]  %s3, 512, %s192, [#allocation7], 128, 128, 8
        $region24: #{tpu_custom_call.1} parent=11 // pred_fallthru
          _
        // Predicated region
        $region25: #{tpu_custom_call.1} parent=11 // pred_check
          %p198 = pneg %p128
        $region26: #{tpu_custom_call.1} parent=11 // pred_check_branch
          %200 = sbr.rel (%p198) target = $region28
        $region27: #{tpu_custom_call.1} parent=11 // pred_region
          _
        $region28: #{tpu_custom_call.1} parent=11 // pred_fallthru
          _
      $region12: #{tpu_custom_call.1} parent=5 // pred_fallthru
        _
      %p201 = scmp.lt.s32.totalorder %s18, 6
      // Predicated region
      $region29: #{tpu_custom_call.1} parent=5 // pred_check
        %p202 = pneg %p201
      $region30: #{tpu_custom_call.1} parent=5 // pred_check_branch
        %204 = sbr.rel (%p202) target = $region32
      $region31: #{tpu_custom_call.1} parent=5 // pred_region
        // Predicated region
        $region33: #{tpu_custom_call.1} parent=31 // pred_check
          %p205 = pneg %p38
        $region34: #{tpu_custom_call.1} parent=31 // pred_check_branch
          %207 = sbr.rel (%p205) target = $region36
        $region35: #{tpu_custom_call.1} parent=31 // pred_region
          %s208 = sand.u32 %s28, 1
          %s209 = scalar_lea.sflag [#allocation4], %s208
          %s210 = sand.u32 %s28, 1
          %s211 = smul.addr %s210, 2
          %s212 = scalar_lea.vmem [#allocation3], %s211
          %s214 = ssub.s32 32, 32
          %215 = vsyncadd %s209, %s214
          %s216 = smul.addr %s18, 32
          %s217 = scalar_lea.hbm %s0, %s216
          %s219 = sshll.u32 %s212, 4
          %s220 = int_to_ptr.vmem [resolvable:$true] %s219
          %222 = dma.hbm_to_vmem [thread:$0]  %s217, 32, %s220, %s209
        $region36: #{tpu_custom_call.1} parent=31 // pred_fallthru
          _
      $region32: #{tpu_custom_call.1} parent=5 // pred_fallthru
        _
      %p223 = scmp.le.s32.totalorder 1, %s18
      %p224 = scmp.lt.s32.totalorder %s18, 7
      %p225 = pnand %p223, %p224
      %p226 = pneg %p225
      // Predicated region
      $region37: #{tpu_custom_call.1} parent=5 // pred_check
        _
      $region38: #{tpu_custom_call.1} parent=5 // pred_check_branch
        %228 = sbr.rel (%p225) target = $region40
      $region39: #{tpu_custom_call.1} parent=5 // pred_region
        %s229 = ssub.s32 %s18, 1
        %s230 = sand.u32 %s31, 1
        %s231 = scalar_lea.sflag [#allocation4], %s230
        %s232 = sand.u32 %s31, 1
        %s233 = smul.addr %s232, 2
        %s234 = scalar_lea.vmem [#allocation3], %s233
        // Predicated region
        $region41: #{tpu_custom_call.1} parent=39 // pred_check
          %p235 = pneg %p44
        $region42: #{tpu_custom_call.1} parent=39 // pred_check_branch
          %237 = sbr.rel (%p235) target = $region44
        $region43: #{tpu_custom_call.1} parent=39 // pred_region
          %238 = dma.done %s231, 32
        $region44: #{tpu_custom_call.1} parent=39 // pred_fallthru
          _
        // Predicated region
        $region45: #{tpu_custom_call.1} parent=39 // pred_check
          %p239 = pneg %p86
        $region46: #{tpu_custom_call.1} parent=39 // pred_check_branch
          %241 = sbr.rel (%p239) target = $region48
        $region47: #{tpu_custom_call.1} parent=39 // pred_region
          %242 = dma.done [#allocation7], 256
        $region48: #{tpu_custom_call.1} parent=39 // pred_fallthru
          _
        // Predicated region
        $region49: #{tpu_custom_call.1} parent=39 // pred_check
          %p243 = pneg %p107
        $region50: #{tpu_custom_call.1} parent=39 // pred_check_branch
          %245 = sbr.rel (%p243) target = $region52
        $region51: #{tpu_custom_call.1} parent=39 // pred_region
          %246 = dma.done [#allocation7], 512
        $region52: #{tpu_custom_call.1} parent=39 // pred_fallthru
          _
        %s247 = sand.u32 %s31, 1
        %s248 = scalar_lea.sflag [#allocation4], %s247
        %s249 = sand.u32 %s31, 1
        %s250 = smul.addr %s249, 2
        %s251 = scalar_lea.vmem [#allocation3], %s250
        %p252 = pneg %p44
        %p253 = pneg %p41
        %p254 = pneg %p65
        %p255 = pneg %p62
        %p256 = pneg %p86
        %p257 = pneg %p83
        %p258 = pneg %p107
        %p259 = pneg %p104
        %p260 = pneg %p128
        %p261 = pneg %p125
        %p262 = pneg %p154
        %p263 = pneg %p151
        %s264 = sand.u32 %s141, 1
        %s265 = scalar_lea.sflag [#allocation5], %s264
        %s266 = sand.u32 %s141, 1
        %s267 = smul.addr %s266, 2
        %s268 = scalar_lea.vmem [#allocation9], %s267
        %p269 = scmp.eq.s32.totalorder %s23, 0
        // Predicated region
        $region53: #{tpu_custom_call.1} parent=39 // pred_check
          %p270 = pneg %p269
        $region54: #{tpu_custom_call.1} parent=39 // pred_check_branch
          %272 = sbr.rel (%p270) target = $region56
        $region55: #{tpu_custom_call.1} parent=39 // pred_region
          %v273 = vld [vmem:[%s1] sm:$0x3]
          %vm274 = vcmask 254976
          %275 = vst.msk [vmem:[#allocation2] sm:$0x3] %vm274, %v273
        $region56: #{tpu_custom_call.1} parent=39 // pred_fallthru
          _
        %v276 = vld [vmem:[%s234] sm:$0x3]
        %v277 = vld [vmem:[#allocation2] sm:$0x3]
        %v278 = vld [vmem:[#allocation6] sm:$0xff]
        %v279 = vld [vmem:[#allocation6 + $0x8] sm:$0xff]
        %v280 = vld [vmem:[#allocation8] sm:$0xff]
        %v281 = vld [vmem:[#allocation8 + $0x8] sm:$0xff]
        %v282 = vld [vmem:[#allocation8 + $0x10] sm:$0xff]
        %v283 = vld [vmem:[#allocation8 + $0x18] sm:$0xff]
        %vm284 = vcmask 261120
        %v286 = vsel %vm284, %v277, 0
        %288 = vmatprep.subr.mxu0 0.0
        %289 = vmatpush1.msra.mxu0 %v280
        %290 = vmatprep.subr.mxu0 0.0
        %291 = vmatpush1.msra.mxu0 %v281
        %292 = vmatprep.subr.mxu0 0.0
        %293 = vmatpush1.msra.mxu0 %v282
        %294 = vmatprep.subr.mxu0 0.0
        %295 = vmatpush1.msra.mxu0 %v283
        %296 = vmatprep.subr.mxu0 0.0
        %297 = vmatpush1.msra.mxu0 0.0
        %298 = vmatprep.subr.mxu0 0.0
        %299 = vmatpush1.msra.mxu0 0.0
        %300 = vmatprep.subr.mxu0 0.0
        %301 = vmatpush1.msra.mxu0 0.0
        %302 = vmatprep.subr.mxu0 0.0
        %303 = vmatpush1.msra.mxu0 0.0
        %304 = vmatprep.subr.mxu0 0.0
        %305 = vmatpush1.msra.mxu0 0.0
        %306 = vmatprep.subr.mxu0 0.0
        %307 = vmatpush1.msra.mxu0 0.0
        %308 = vmatprep.subr.mxu0 0.0
        %309 = vmatpush1.msra.mxu0 0.0
        %310 = vmatprep.subr.mxu0 0.0
        %311 = vmatpush1.msra.mxu0 0.0
        %312 = vmatprep.subr.mxu0 0.0
        %313 = vmatpush1.msra.mxu0 0.0
        %314 = vmatprep.subr.mxu0 0.0
        %315 = vmatpush1.msra.mxu0 0.0
        %316 = vmatprep.subr.mxu0 0.0
        %317 = vmatpush1.msra.mxu0 0.0
        %318 = vmatprep.subr.mxu0 0.0
        %319 = vmatpush1.msra.mxu0 0.0
        %320 = vmatprep.subr.mxu0 0.0
        %321 = vmatpush1.msra.mxu0 0.0
        %322 = vmatprep.subr.mxu0 0.0
        %323 = vmatpush1.msra.mxu0 0.0
        %324 = vmatprep.subr.mxu0 0.0
        %325 = vmatpush1.msra.mxu0 0.0
        %326 = vmatprep.subr.mxu0 0.0
        %327 = vmatpush1.msra.mxu0 0.0
        %328 = vmatprep.subr.mxu0 0.0
        %329 = vmatpush1.msra.mxu0 0.0
        %330 = vmatprep.subr.mxu0 0.0
        %331 = vmatpush1.msra.mxu0 0.0
        %332 = vmatprep.subr.mxu0 0.0
        %333 = vmatpush1.msra.mxu0 0.0
        %334 = vmatprep.subr.mxu0 0.0
        %335 = vmatpush1.msra.mxu0 0.0
        %336 = vmatprep.subr.mxu0 0.0
        %337 = vmatpush1.msra.mxu0 0.0
        %338 = vmatprep.subr.mxu0 0.0
        %339 = vmatpush1.msra.mxu0 0.0
        %340 = vmatprep.subr.mxu0 0.0
        %341 = vmatpush1.msra.mxu0 0.0
        %342 = vmatprep.subr.mxu0 0.0
        %343 = vmatpush1.msra.mxu0 0.0
        %344 = vmatprep.subr.mxu0 0.0
        %345 = vmatpush1.msra.mxu0 0.0
        %346 = vmatprep.subr.mxu0 0.0
        %347 = vmatpush1.msra.mxu0 0.0
        %348 = vmatprep.subr.mxu0 0.0
        %349 = vmatpush1.msra.mxu0 0.0
        %350 = vmatprep.subr.mxu0 0.0
        %351 = vmatpush1.msra.mxu0 0.0
        %352 = vmatprep.mubr.f32.mxu0 0.0
        %353 = vmatmul.mubr.f32.gmra.mrb[0].mxu0 %v286
        %v354 = vpop.f32.mrb[0].mxu0
        %v355 = vadd.f32 0.0, %v354
        %v356 = vpop.f32.mrb[0].mxu0
        %357 = vdwg.mxu0
        %vm358 = vcmask 130048
        %v360 = vsel %vm358, %v276, 0
        %362 = vmatprep.subr.mxu0 0.0
        %363 = vmatpush1.msra.mxu0 %v278
        %364 = vmatprep.subr.mxu0 0.0
        %365 = vmatpush1.msra.mxu0 %v279
        %366 = vmatprep.subr.mxu0 0.0
        %367 = vmatpush1.msra.mxu0 0.0
        %368 = vmatprep.subr.mxu0 0.0
        %369 = vmatpush1.msra.mxu0 0.0
        %370 = vmatprep.subr.mxu0 0.0
        %371 = vmatpush1.msra.mxu0 0.0
        %372 = vmatprep.subr.mxu0 0.0
        %373 = vmatpush1.msra.mxu0 0.0
        %374 = vmatprep.subr.mxu0 0.0
        %375 = vmatpush1.msra.mxu0 0.0
        %376 = vmatprep.subr.mxu0 0.0
        %377 = vmatpush1.msra.mxu0 0.0
        %378 = vmatprep.subr.mxu0 0.0
        %379 = vmatpush1.msra.mxu0 0.0
        %380 = vmatprep.subr.mxu0 0.0
        %381 = vmatpush1.msra.mxu0 0.0
        %382 = vmatprep.subr.mxu0 0.0
        %383 = vmatpush1.msra.mxu0 0.0
        %384 = vmatprep.subr.mxu0 0.0
        %385 = vmatpush1.msra.mxu0 0.0
        %386 = vmatprep.subr.mxu0 0.0
        %387 = vmatpush1.msra.mxu0 0.0
        %388 = vmatprep.subr.mxu0 0.0
        %389 = vmatpush1.msra.mxu0 0.0
        %390 = vmatprep.subr.mxu0 0.0
        %391 = vmatpush1.msra.mxu0 0.0
        %392 = vmatprep.subr.mxu0 0.0
        %393 = vmatpush1.msra.mxu0 0.0
        %394 = vmatprep.subr.mxu0 0.0
        %395 = vmatpush1.msra.mxu0 0.0
        %396 = vmatprep.subr.mxu0 0.0
        %397 = vmatpush1.msra.mxu0 0.0
        %398 = vmatprep.subr.mxu0 0.0
        %399 = vmatpush1.msra.mxu0 0.0
        %400 = vmatprep.subr.mxu0 0.0
        %401 = vmatpush1.msra.mxu0 0.0
        %402 = vmatprep.subr.mxu0 0.0
        %403 = vmatpush1.msra.mxu0 0.0
        %404 = vmatprep.subr.mxu0 0.0
        %405 = vmatpush1.msra.mxu0 0.0
        %406 = vmatprep.subr.mxu0 0.0
        %407 = vmatpush1.msra.mxu0 0.0
        %408 = vmatprep.subr.mxu0 0.0
        %409 = vmatpush1.msra.mxu0 0.0
        %410 = vmatprep.subr.mxu0 0.0
        %411 = vmatpush1.msra.mxu0 0.0
        %412 = vmatprep.subr.mxu0 0.0
        %413 = vmatpush1.msra.mxu0 0.0
        %414 = vmatprep.subr.mxu0 0.0
        %415 = vmatpush1.msra.mxu0 0.0
        %416 = vmatprep.subr.mxu0 0.0
        %417 = vmatpush1.msra.mxu0 0.0
        %418 = vmatprep.subr.mxu0 0.0
        %419 = vmatpush1.msra.mxu0 0.0
        %420 = vmatprep.subr.mxu0 0.0
        %421 = vmatpush1.msra.mxu0 0.0
        %422 = vmatprep.subr.mxu0 0.0
        %423 = vmatpush1.msra.mxu0 0.0
        %424 = vmatprep.subr.mxu0 0.0
        %425 = vmatpush1.msra.mxu0 0.0
        %426 = vmatprep.mubr.f32.mxu0 0.0
        %427 = vmatmul.mubr.f32.gmra.mrb[0].mxu0 %v360
        %v428 = vpop.f32.mrb[0].mxu0
        %v429 = vadd.f32 %v355, %v428
        %v430 = vpop.f32.mrb[0].mxu0
        %431 = vdwg.mxu0
        %v432 = vld [vmem:[%s4] sm:$0x1]
        %v434 = vlaneseq
        %v435 = vshrl.u32 %v434, 7
        %v436 = vsub.s32 0, %v435
        %v437 = vrot.slane %v432, %v436
        %v439 = vadd.f32 %v429, %v437
        %v440 = vmax.f32 %v439, 0.0
        %vm441 = vcmask 254976
        %442 = vst.msk [vmem:[#allocation2] sm:$0x3] %vm441, %v440
        %443 = vst.msk [vmem:[%s268] sm:$0x3] %vm441, %v440
        %s444 = sand.u32 %s141, 1
        %s445 = scalar_lea.sflag [#allocation5], %s444
        %s446 = sand.u32 %s141, 1
        %s447 = smul.addr %s446, 2
        %s448 = scalar_lea.vmem [#allocation9], %s447
        // Predicated region
        $region57: #{tpu_custom_call.1} parent=39 // pred_check
          %p449 = pneg %p151
        $region58: #{tpu_custom_call.1} parent=39 // pred_check_branch
          %451 = sbr.rel (%p449) target = $region60
        $region59: #{tpu_custom_call.1} parent=39 // pred_region
          %s453 = ssub.s32 32, 32
          %454 = vsyncadd %s445, %s453
          %s455 = smul.addr %s23, 32
          %s456 = scalar_lea.hbm %s5, %s455
          %s458 = sshll.u32 %s448, 4
          %s459 = int_to_ptr.vmem [resolvable:$true] %s458
          %461 = dma.vmem_to_hbm [thread:$0]  %s459, 32, %s456, %s445
        $region60: #{tpu_custom_call.1} parent=39 // pred_fallthru
          _
      $region40: #{tpu_custom_call.1} parent=5 // pred_fallthru
        _
      %p462 = scmp.le.s32.totalorder 2, %s18
      // Predicated region
      $region61: #{tpu_custom_call.1} parent=5 // pred_check
        %p463 = pneg %p462
      $region62: #{tpu_custom_call.1} parent=5 // pred_check_branch
        %465 = sbr.rel (%p463) target = $region64
      $region63: #{tpu_custom_call.1} parent=5 // pred_region
        %s466 = ssub.s32 %s18, 2
        // Predicated region
        $region65: #{tpu_custom_call.1} parent=63 // pred_check
          %p467 = pneg %p157
        $region66: #{tpu_custom_call.1} parent=63 // pred_check_branch
          %469 = sbr.rel (%p467) target = $region68
        $region67: #{tpu_custom_call.1} parent=63 // pred_region
          %s470 = sand.u32 %s142, 1
          %s471 = scalar_lea.sflag [#allocation5], %s470
          %s472 = sand.u32 %s142, 1
          %s473 = smul.addr %s472, 2
          %s474 = scalar_lea.vmem [#allocation9], %s473
          %475 = dma.done %s471, 32
        $region68: #{tpu_custom_call.1} parent=63 // pred_fallthru
          _
      $region64: #{tpu_custom_call.1} parent=5 // pred_fallthru
        _
    $region6: #{tpu_custom_call.1} parent=1 // loop_footer
      %s22 = sadd.s32 1, %s18
    $region7: #{tpu_custom_call.1} parent=1 // loop_footer_branch
      %17 = sbr.rel target = $region3
    $region8: #{tpu_custom_call.1} parent=1 // loop_exit
      _
    %476 = vsyncpa [#allocation4], 1
    %s477 = scalar_lea.sflag [#allocation4], 1
    %478 = vsyncpa %s477, 1
    %479 = vsyncpa [#allocation7], 1
    %480 = vsyncpa [#allocation5], 1
    %s481 = scalar_lea.sflag [#allocation5], 1
    %482 = vsyncpa %s481, 1

</llo_original>
